<compile_context>
chip_gen: v7x
topology: tpu7x:2x2x1
jax: 0.10.0
libtpu: 0.0.40
codegen_flags: <defaults>
</compile_context>

<pallas_src>
import functools

import jax
import jax.numpy as jnp
import numpy as np
from jax.experimental import pallas as pl
from jax.experimental.pallas import tpu as pltpu


def _odefunc_kernel(x_ref, m_ref, w1_ref, b1_ref, w2_ref, b2_ref, o_ref,
                    *, H, W):
    """One packed batch block per grid step.

    x_ref : (BC, HW)     activations, BC = b_blk*C rows (batch-packed channels
                         on sublanes), flattened pixels on the lane axis.
    m_ref : (8, HW)      0/1 f32 border-validity masks for the 8 off-center taps.
    w1_ref: (BC, 9*BC)   conv1 block-diagonal tap weights (tap-major columns).
    b1_ref: (BC, 1)
    w2_ref: (BC, 9*BC)   conv2 tap weights.
    b2_ref: (BC, 1)
    o_ref : (BC, HW)
    """
    BC, HW = o_ref.shape
    x = x_ref[...].astype(jnp.float32)
    masks = m_ref[...]                       # (8, HW), loaded once per step

    def gather_taps(inp):
        # Stack the 9 shifted/masked views into one (9*BC, HW) operand so each
        # conv is a single deep-K MXU matmul (one result pop instead of 9).
        pieces = []
        for t in range(9):
            dy = t // 3 - 1
            dx = t % 3 - 1
            s = dy * W + dx
            if s == 0:
                pieces.append(inp)
            else:
                # pieces[t][:, p] = inp[:, p + s] (lane rotation, XLU slot);
                # wrapped positions are exactly the zero-padded taps -> *0.
                rolled = pltpu.roll(inp, (-s) % HW, 1)
                m = t if t < 4 else t - 1              # skip the center tap
                pieces.append(rolled * masks[m:m + 1, :])   # (1,HW) broadcast
        return jnp.concatenate(pieces, axis=0)         # (9*BC, HW)

    def conv3x3(inp, w_ref, b_ref):
        # NOTE(scale): at real FlashInternImage widths (C >= 128) cast both
        # matmul operands to bfloat16 here (keep the f32 accumulator) — ~2x
        # MXU throughput and half the vld/vst traffic; pointless at toy C=4.
        return jnp.dot(w_ref[...], gather_taps(inp),
                       preferred_element_type=jnp.float32) + b_ref[...]

    h1 = jnp.maximum(conv3x3(x, w1_ref, b1_ref), 0.0)   # conv1 + bias + ReLU
    y = conv3x3(h1, w2_ref, b2_ref)                     # conv2 + bias
    o_ref[...] = y.astype(o_ref.dtype)


@jax.jit
def odefunc_forward(t, x_nchw, w1_oihw, b1, w2_oihw, b2):
    """Mirror of ODEFunc.forward(t, x): t is accepted and ignored."""
    del t  # ODEFunc ignores t
    N, C, H, W = x_nchw.shape
    HW = H * W

    # Smallest batch factor that makes b_blk*C a multiple of 8 (full sublane
    # occupancy) while keeping the parallel grid as long as possible (matters
    # for v7x's two TensorCores; on v5e/v6e the grid is serial so packing is a
    # pure win).  Falls back to packing everything if no factor lines up.
    b_blk = N
    for cand in range(1, N + 1):
        if N % cand == 0 and (cand * C) % 8 == 0:
            b_blk = cand
            break
    BC = b_blk * C
    n_blocks = N // b_blk

    # Free, layout-preserving reshape (no transpose, no pad):
    # NCHW -> (N/b_blk, b_blk*C, HW).
    x_flat = x_nchw.reshape(n_blocks, BC, HW)

    # Conv weights OIHW -> one (BC, 9*BC) slab per conv: tap-major columns,
    # each tap a (BC, BC) block-diagonal replication of its (Cout, Cin) matrix
    # so a single matmul handles every packed batch element.
    eye_b = jnp.eye(b_blk, dtype=jnp.float32)

    def to_slab(w_oihw):
        taps = jnp.transpose(w_oihw, (2, 3, 0, 1)).reshape(9, C, C)  # (9,Co,Ci)
        bd = jnp.einsum('pq,tij->tpiqj', eye_b, taps).reshape(9, BC, BC)
        return jnp.transpose(bd, (1, 0, 2)).reshape(BC, 9 * BC)

    w1_s, w2_s = to_slab(w1_oihw), to_slab(w2_oihw)
    b1_c = jnp.tile(b1.reshape(1, C), (b_blk, 1)).reshape(BC, 1)
    b2_c = jnp.tile(b2.reshape(1, C), (b_blk, 1)).reshape(BC, 1)

    # Host-precomputed 0/1 border masks for the 8 off-center taps: (8, HW).
    rows, cols = np.arange(HW) // W, np.arange(HW) % W
    masks = np.stack([
        ((rows + dy >= 0) & (rows + dy < H) & (cols + dx >= 0) & (cols + dx < W))
        for dy in (-1, 0, 1) for dx in (-1, 0, 1) if not (dy == 0 and dx == 0)
    ]).astype(np.float32)
    masks = jnp.asarray(masks)

    kernel = functools.partial(_odefunc_kernel, H=H, W=W)
    const = dict(pipeline_mode=pl.Buffered(1))   # grid-invariant: single-buffer

    # NOTE(scale): at real model sizes (C=256+, H,W=56+) add a spatial row-tile
    # grid axis with a halo (regenerating the masks per tile), budget VMEM
    # explicitly for v7x's 64 MiB (keep single-buffered weight slabs + h1 tile
    # + double-buffered I/O tiles under ~48 MiB via vmem_limit_bytes), and use
    # bf16 MXU operands.  At this problem size a packed block is only ~8 KB.
    out_flat = pl.pallas_call(
        kernel,
        out_shape=jax.ShapeDtypeStruct((n_blocks, BC, HW), x_nchw.dtype),
        grid_spec=pltpu.PrefetchScalarGridSpec(
            num_scalar_prefetch=0,
            grid=(n_blocks,),
            in_specs=[
                pl.BlockSpec((None, BC, HW), lambda n: (n, 0, 0)),       # x
                pl.BlockSpec((8, HW), lambda n: (0, 0), **const),        # masks
                pl.BlockSpec((BC, 9 * BC), lambda n: (0, 0), **const),   # w1
                pl.BlockSpec((BC, 1), lambda n: (0, 0), **const),        # b1
                pl.BlockSpec((BC, 9 * BC), lambda n: (0, 0), **const),   # w2
                pl.BlockSpec((BC, 1), lambda n: (0, 0), **const),        # b2
            ],
            out_specs=pl.BlockSpec((None, BC, HW), lambda n: (n, 0, 0)),
        ),
        compiler_params=pltpu.CompilerParams(
            dimension_semantics=("parallel",)),
    )(x_flat, masks, w1_s, b1_c, w2_s, b2_c)

    # Free reshape back to NCHW (PyTorch convention).
    return out_flat.reshape(N, C, H, W)


def _reference_forward(x_nchw, w1_oihw, b1, w2_oihw, b2):
    """Plain-JAX reference (matches PyTorch semantics) for verification."""
    dn = ('NCHW', 'OIHW', 'NCHW')
    y = jax.lax.conv_general_dilated(x_nchw, w1_oihw, (1, 1), 'SAME',
                                     dimension_numbers=dn)
    y = y + b1[None, :, None, None]
    y = jnp.maximum(y, 0.0)
    y = jax.lax.conv_general_dilated(y, w2_oihw, (1, 1), 'SAME',
                                     dimension_numbers=dn)
    y = y + b2[None, :, None, None]
    return y


if __name__ == "__main__":
    # Small shapes consistent with the module: batch=2, channels=4, spatial=16.
    N, C, H, W = 2, 4, 16, 16

    key = jax.random.PRNGKey(0)
    kx, kw1, kb1, kw2, kb2 = jax.random.split(key, 5)

    x = jax.random.normal(kx, (N, C, H, W), dtype=jnp.float32)

    # Deterministic synthetic parameters (PyTorch-like fan-in scaling).
    fan_in = C * 3 * 3
    bound = 1.0 / np.sqrt(fan_in)
    w1 = jax.random.uniform(kw1, (C, C, 3, 3), jnp.float32, -bound, bound)
    b1 = jax.random.uniform(kb1, (C,), jnp.float32, -bound, bound)
    w2 = jax.random.uniform(kw2, (C, C, 3, 3), jnp.float32, -bound, bound)
    b2 = jax.random.uniform(kb2, (C,), jnp.float32, -bound, bound)

    t = jnp.float32(0.0)  # ignored, as in ODEFunc.forward

    out = odefunc_forward(t, x, w1, b1, w2, b2)
    out = jax.block_until_ready(out)

    ref = _reference_forward(x, w1, b1, w2, b2)
    np.testing.assert_allclose(np.asarray(out), np.asarray(ref),
                               rtol=1e-4, atol=1e-4)

    print("KERNEL_OK")
</pallas_src>

<mosaic_0001>
module attributes {stable_mosaic.version = 11 : i64} {
  func.func @_odefunc_kernel(%arg0: i32, %arg1: memref<1x8x256xf32, #tpu.memory_space<vmem>>, %arg2: memref<8x256xf32, #tpu.memory_space<vmem>>, %arg3: memref<8x72xf32, #tpu.memory_space<vmem>>, %arg4: memref<8x1xf32, #tpu.memory_space<vmem>>, %arg5: memref<8x72xf32, #tpu.memory_space<vmem>>, %arg6: memref<8x1xf32, #tpu.memory_space<vmem>>, %arg7: memref<1x8x256xf32, #tpu.memory_space<vmem>>) attributes {dimension_semantics = [#tpu.dimension_semantics<parallel>], iteration_bounds = array<i64: 1>, scalar_prefetch = 0 : i64, scratch_operands = 0 : i64, tpu.core_type = #tpu.core_type<tc>, window_params = [{transform_indices = @transform_0, window_bounds = array<i64: 1, 8, 256>}, {pipeline_mode = #tpu.pipeline_mode<synchronous>, transform_indices = @transform_1, window_bounds = array<i64: 8, 256>}, {pipeline_mode = #tpu.pipeline_mode<synchronous>, transform_indices = @transform_2, window_bounds = array<i64: 8, 72>}, {pipeline_mode = #tpu.pipeline_mode<synchronous>, transform_indices = @transform_3, window_bounds = array<i64: 8, 1>}, {pipeline_mode = #tpu.pipeline_mode<synchronous>, transform_indices = @transform_4, window_bounds = array<i64: 8, 72>}, {pipeline_mode = #tpu.pipeline_mode<synchronous>, transform_indices = @transform_5, window_bounds = array<i64: 8, 1>}, {transform_indices = @transform_6, window_bounds = array<i64: 1, 8, 256>}]} {
    %c0 = arith.constant 0 : index
    %c0_0 = arith.constant 0 : index
    %c0_1 = arith.constant 0 : index
    %0 = vector.load %arg1[%c0, %c0_0, %c0_1] : memref<1x8x256xf32, #tpu.memory_space<vmem>>, vector<1x8x256xf32>
    %1 = vector.shape_cast %0 : vector<1x8x256xf32> to vector<8x256xf32>
    %c0_2 = arith.constant 0 : index
    %c0_3 = arith.constant 0 : index
    %2 = vector.load %arg2[%c0_2, %c0_3] : memref<8x256xf32, #tpu.memory_space<vmem>>, vector<8x256xf32>
    %c0_4 = arith.constant 0 : index
    %c0_5 = arith.constant 0 : index
    %3 = vector.load %arg3[%c0_4, %c0_5] : memref<8x72xf32, #tpu.memory_space<vmem>>, vector<8x72xf32>
    %c17_i32 = arith.constant 17 : i32
    %4 = tpu.dynamic_rotate %1 by %c17_i32 dim 1 : vector<8x256xf32>, i32 -> vector<8x256xf32>
    %5 = vector.extract_strided_slice %2 {offsets = [0, 0], sizes = [1, 256], strides = [1, 1]} : vector<8x256xf32> to vector<1x256xf32>
    %6 = vector.broadcast %5 : vector<1x256xf32> to vector<8x256xf32>
    %7 = arith.mulf %4, %6 : vector<8x256xf32>
    %c16_i32 = arith.constant 16 : i32
    %8 = tpu.dynamic_rotate %1 by %c16_i32 dim 1 : vector<8x256xf32>, i32 -> vector<8x256xf32>
    %9 = vector.extract_strided_slice %2 {offsets = [1, 0], sizes = [1, 256], strides = [1, 1]} : vector<8x256xf32> to vector<1x256xf32>
    %10 = vector.broadcast %9 : vector<1x256xf32> to vector<8x256xf32>
    %11 = arith.mulf %8, %10 : vector<8x256xf32>
    %c15_i32 = arith.constant 15 : i32
    %12 = tpu.dynamic_rotate %1 by %c15_i32 dim 1 : vector<8x256xf32>, i32 -> vector<8x256xf32>
    %13 = vector.extract_strided_slice %2 {offsets = [2, 0], sizes = [1, 256], strides = [1, 1]} : vector<8x256xf32> to vector<1x256xf32>
    %14 = vector.broadcast %13 : vector<1x256xf32> to vector<8x256xf32>
    %15 = arith.mulf %12, %14 : vector<8x256xf32>
    %c1_i32 = arith.constant 1 : i32
    %16 = tpu.dynamic_rotate %1 by %c1_i32 dim 1 : vector<8x256xf32>, i32 -> vector<8x256xf32>
    %17 = vector.extract_strided_slice %2 {offsets = [3, 0], sizes = [1, 256], strides = [1, 1]} : vector<8x256xf32> to vector<1x256xf32>
    %18 = vector.broadcast %17 : vector<1x256xf32> to vector<8x256xf32>
    %19 = arith.mulf %16, %18 : vector<8x256xf32>
    %c255_i32 = arith.constant 255 : i32
    %20 = tpu.dynamic_rotate %1 by %c255_i32 dim 1 : vector<8x256xf32>, i32 -> vector<8x256xf32>
    %21 = vector.extract_strided_slice %2 {offsets = [4, 0], sizes = [1, 256], strides = [1, 1]} : vector<8x256xf32> to vector<1x256xf32>
    %22 = vector.broadcast %21 : vector<1x256xf32> to vector<8x256xf32>
    %23 = arith.mulf %20, %22 : vector<8x256xf32>
    %c241_i32 = arith.constant 241 : i32
    %24 = tpu.dynamic_rotate %1 by %c241_i32 dim 1 : vector<8x256xf32>, i32 -> vector<8x256xf32>
    %25 = vector.extract_strided_slice %2 {offsets = [5, 0], sizes = [1, 256], strides = [1, 1]} : vector<8x256xf32> to vector<1x256xf32>
    %26 = vector.broadcast %25 : vector<1x256xf32> to vector<8x256xf32>
    %27 = arith.mulf %24, %26 : vector<8x256xf32>
    %c240_i32 = arith.constant 240 : i32
    %28 = tpu.dynamic_rotate %1 by %c240_i32 dim 1 : vector<8x256xf32>, i32 -> vector<8x256xf32>
    %29 = vector.extract_strided_slice %2 {offsets = [6, 0], sizes = [1, 256], strides = [1, 1]} : vector<8x256xf32> to vector<1x256xf32>
    %30 = vector.broadcast %29 : vector<1x256xf32> to vector<8x256xf32>
    %31 = arith.mulf %28, %30 : vector<8x256xf32>
    %c239_i32 = arith.constant 239 : i32
    %32 = tpu.dynamic_rotate %1 by %c239_i32 dim 1 : vector<8x256xf32>, i32 -> vector<8x256xf32>
    %33 = vector.extract_strided_slice %2 {offsets = [7, 0], sizes = [1, 256], strides = [1, 1]} : vector<8x256xf32> to vector<1x256xf32>
    %34 = vector.broadcast %33 : vector<1x256xf32> to vector<8x256xf32>
    %35 = arith.mulf %32, %34 : vector<8x256xf32>
    %36 = tpu.concatenate %7, %11, %15, %19, %1, %23, %27, %31, %35 in 0 : vector<8x256xf32>, vector<8x256xf32>, vector<8x256xf32>, vector<8x256xf32>, vector<8x256xf32>, vector<8x256xf32>, vector<8x256xf32>, vector<8x256xf32>, vector<8x256xf32> -> vector<72x256xf32>
    %cst = arith.constant dense<0.000000e+00> : vector<8x256xf32>
    %37 = tpu.matmul %3, %36, %cst {dimension_numbers = #tpu.dot_dimension_numbers<[1], [0], [0], [1], [0, 0, 1, 1], [], []>} : vector<8x72xf32>, vector<72x256xf32>, vector<8x256xf32> -> vector<8x256xf32>
    %c0_6 = arith.constant 0 : index
    %c0_7 = arith.constant 0 : index
    %38 = vector.load %arg4[%c0_6, %c0_7] : memref<8x1xf32, #tpu.memory_space<vmem>>, vector<8x1xf32>
    %39 = vector.broadcast %38 : vector<8x1xf32> to vector<8x256xf32>
    %40 = arith.addf %37, %39 : vector<8x256xf32>
    %cst_8 = arith.constant 0.000000e+00 : f32
    %41 = vector.broadcast %cst_8 : f32 to vector<8x256xf32>
    %42 = arith.maximumf %40, %41 : vector<8x256xf32>
    %c0_9 = arith.constant 0 : index
    %c0_10 = arith.constant 0 : index
    %43 = vector.load %arg5[%c0_9, %c0_10] : memref<8x72xf32, #tpu.memory_space<vmem>>, vector<8x72xf32>
    %c17_i32_11 = arith.constant 17 : i32
    %44 = tpu.dynamic_rotate %42 by %c17_i32_11 dim 1 : vector<8x256xf32>, i32 -> vector<8x256xf32>
    %45 = vector.extract_strided_slice %2 {offsets = [0, 0], sizes = [1, 256], strides = [1, 1]} : vector<8x256xf32> to vector<1x256xf32>
    %46 = vector.broadcast %45 : vector<1x256xf32> to vector<8x256xf32>
    %47 = arith.mulf %44, %46 : vector<8x256xf32>
    %c16_i32_12 = arith.constant 16 : i32
    %48 = tpu.dynamic_rotate %42 by %c16_i32_12 dim 1 : vector<8x256xf32>, i32 -> vector<8x256xf32>
    %49 = vector.extract_strided_slice %2 {offsets = [1, 0], sizes = [1, 256], strides = [1, 1]} : vector<8x256xf32> to vector<1x256xf32>
    %50 = vector.broadcast %49 : vector<1x256xf32> to vector<8x256xf32>
    %51 = arith.mulf %48, %50 : vector<8x256xf32>
    %c15_i32_13 = arith.constant 15 : i32
    %52 = tpu.dynamic_rotate %42 by %c15_i32_13 dim 1 : vector<8x256xf32>, i32 -> vector<8x256xf32>
    %53 = vector.extract_strided_slice %2 {offsets = [2, 0], sizes = [1, 256], strides = [1, 1]} : vector<8x256xf32> to vector<1x256xf32>
    %54 = vector.broadcast %53 : vector<1x256xf32> to vector<8x256xf32>
    %55 = arith.mulf %52, %54 : vector<8x256xf32>
    %c1_i32_14 = arith.constant 1 : i32
    %56 = tpu.dynamic_rotate %42 by %c1_i32_14 dim 1 : vector<8x256xf32>, i32 -> vector<8x256xf32>
    %57 = vector.extract_strided_slice %2 {offsets = [3, 0], sizes = [1, 256], strides = [1, 1]} : vector<8x256xf32> to vector<1x256xf32>
    %58 = vector.broadcast %57 : vector<1x256xf32> to vector<8x256xf32>
    %59 = arith.mulf %56, %58 : vector<8x256xf32>
    %c255_i32_15 = arith.constant 255 : i32
    %60 = tpu.dynamic_rotate %42 by %c255_i32_15 dim 1 : vector<8x256xf32>, i32 -> vector<8x256xf32>
    %61 = vector.extract_strided_slice %2 {offsets = [4, 0], sizes = [1, 256], strides = [1, 1]} : vector<8x256xf32> to vector<1x256xf32>
    %62 = vector.broadcast %61 : vector<1x256xf32> to vector<8x256xf32>
    %63 = arith.mulf %60, %62 : vector<8x256xf32>
    %c241_i32_16 = arith.constant 241 : i32
    %64 = tpu.dynamic_rotate %42 by %c241_i32_16 dim 1 : vector<8x256xf32>, i32 -> vector<8x256xf32>
    %65 = vector.extract_strided_slice %2 {offsets = [5, 0], sizes = [1, 256], strides = [1, 1]} : vector<8x256xf32> to vector<1x256xf32>
    %66 = vector.broadcast %65 : vector<1x256xf32> to vector<8x256xf32>
    %67 = arith.mulf %64, %66 : vector<8x256xf32>
    %c240_i32_17 = arith.constant 240 : i32
    %68 = tpu.dynamic_rotate %42 by %c240_i32_17 dim 1 : vector<8x256xf32>, i32 -> vector<8x256xf32>
    %69 = vector.extract_strided_slice %2 {offsets = [6, 0], sizes = [1, 256], strides = [1, 1]} : vector<8x256xf32> to vector<1x256xf32>
    %70 = vector.broadcast %69 : vector<1x256xf32> to vector<8x256xf32>
    %71 = arith.mulf %68, %70 : vector<8x256xf32>
    %c239_i32_18 = arith.constant 239 : i32
    %72 = tpu.dynamic_rotate %42 by %c239_i32_18 dim 1 : vector<8x256xf32>, i32 -> vector<8x256xf32>
    %73 = vector.extract_strided_slice %2 {offsets = [7, 0], sizes = [1, 256], strides = [1, 1]} : vector<8x256xf32> to vector<1x256xf32>
    %74 = vector.broadcast %73 : vector<1x256xf32> to vector<8x256xf32>
    %75 = arith.mulf %72, %74 : vector<8x256xf32>
    %76 = tpu.concatenate %47, %51, %55, %59, %42, %63, %67, %71, %75 in 0 : vector<8x256xf32>, vector<8x256xf32>, vector<8x256xf32>, vector<8x256xf32>, vector<8x256xf32>, vector<8x256xf32>, vector<8x256xf32>, vector<8x256xf32>, vector<8x256xf32> -> vector<72x256xf32>
    %cst_19 = arith.constant dense<0.000000e+00> : vector<8x256xf32>
    %77 = tpu.matmul %43, %76, %cst_19 {dimension_numbers = #tpu.dot_dimension_numbers<[1], [0], [0], [1], [0, 0, 1, 1], [], []>} : vector<8x72xf32>, vector<72x256xf32>, vector<8x256xf32> -> vector<8x256xf32>
    %c0_20 = arith.constant 0 : index
    %c0_21 = arith.constant 0 : index
    %78 = vector.load %arg6[%c0_20, %c0_21] : memref<8x1xf32, #tpu.memory_space<vmem>>, vector<8x1xf32>
    %79 = vector.broadcast %78 : vector<8x1xf32> to vector<8x256xf32>
    %80 = arith.addf %77, %79 : vector<8x256xf32>
    %c0_22 = arith.constant 0 : index
    %c0_23 = arith.constant 0 : index
    %c0_24 = arith.constant 0 : index
    %81 = vector.load %arg7[%c0_22, %c0_23, %c0_24] : memref<1x8x256xf32, #tpu.memory_space<vmem>>, vector<1x8x256xf32>
    %82 = vector.shape_cast %81 : vector<1x8x256xf32> to vector<8x256xf32>
    %83 = vector.shape_cast %80 : vector<8x256xf32> to vector<1x8x256xf32>
    tpu.vector_store %arg7[%c0_22, %c0_23, %c0_24], %83 {strides = array<i32>} : memref<1x8x256xf32, #tpu.memory_space<vmem>>, vector<1x8x256xf32>,
    return
  }
  func.func @transform_0(%arg0: i32) -> (i32, i32, i32) {
    %c0_i32 = arith.constant 0 : i32
    %c0_i32_0 = arith.constant 0 : i32
    %c0_i32_1 = arith.constant 0 : i32
    return %arg0, %c0_i32, %c0_i32_0 : i32, i32, i32
  }
  func.func @transform_1(%arg0: i32) -> (i32, i32) {
    %c0_i32 = arith.constant 0 : i32
    %c0_i32_0 = arith.constant 0 : i32
    %c0_i32_1 = arith.constant 0 : i32
    return %c0_i32, %c0_i32_0 : i32, i32
  }
  func.func @transform_2(%arg0: i32) -> (i32, i32) {
    %c0_i32 = arith.constant 0 : i32
    %c0_i32_0 = arith.constant 0 : i32
    %c0_i32_1 = arith.constant 0 : i32
    return %c0_i32, %c0_i32_0 : i32, i32
  }
  func.func @transform_3(%arg0: i32) -> (i32, i32) {
    %c0_i32 = arith.constant 0 : i32
    %c0_i32_0 = arith.constant 0 : i32
    %c0_i32_1 = arith.constant 0 : i32
    return %c0_i32, %c0_i32_0 : i32, i32
  }
  func.func @transform_4(%arg0: i32) -> (i32, i32) {
    %c0_i32 = arith.constant 0 : i32
    %c0_i32_0 = arith.constant 0 : i32
    %c0_i32_1 = arith.constant 0 : i32
    return %c0_i32, %c0_i32_0 : i32, i32
  }
  func.func @transform_5(%arg0: i32) -> (i32, i32) {
    %c0_i32 = arith.constant 0 : i32
    %c0_i32_0 = arith.constant 0 : i32
    %c0_i32_1 = arith.constant 0 : i32
    return %c0_i32, %c0_i32_0 : i32, i32
  }
  func.func @transform_6(%arg0: i32) -> (i32, i32, i32) {
    %c0_i32 = arith.constant 0 : i32
    %c0_i32_0 = arith.constant 0 : i32
    %c0_i32_1 = arith.constant 0 : i32
    return %arg0, %c0_i32, %c0_i32_0 : i32, i32, i32
  }
}

</mosaic_0001>

<llo_original>
// kernel: tile.10
$region0: #{tile.10}
  #allocation0 [shape = 's32[1]{0}', space=sflag, size = 0x4, scoped, tag = 'scoped memory for tile.10']
  %s0 = inlined_call_operand.vmem [shape: f32[4], index: 0, kind: input, shape index: {}]
  %s1 = inlined_call_operand.vmem [shape: f32[2,1,1,4], index: 1, kind: output, shape index: {}]
  // Predicated region
  $region2: #{tile.10} parent=0 // pred_check
    _
  $region3: #{tile.10} parent=0 // pred_check_branch
    %3 = sbr.rel (0) target = $region5
  $region4: #{tile.10} parent=0 // pred_region
    _
  $region5: #{tile.10} parent=0 // pred_fallthru
    _
  %v4 = vld [vmem:[%s0] ss:$0 sm:$0xff]
  %5 = vst [vmem:[%s1] sm:$0x3] %v4

// kernel: tile.0
$region0: #{tile.0}
  %s0 = inlined_call_operand.vmem [shape: f32[2,1,1,4], index: 0, kind: input, shape index: {}]
  %s1 = inlined_call_operand.vmem [shape: f32[8,1], index: 1, kind: output, shape index: {}]
  $region1: #{tile.0} parent=0
    #allocation0 [shape = 'u8[4096]{0}', space=vmem, size = 0x1000, scoped, tag = 'scoped mem for input reshape']
    %s3 = sshllo.u32 0, 2
    %v4 = vld [vmem:[%s0] sm:%s3]
    %5 = vst [vmem:[#allocation0] sm:%s3] %v4
    %v6 = vld [vmem:[#allocation0] sm:$0x3]
    %vm7 = vcmask 7168
    %8 = vst.msk [vmem:[%s1] ss:$4 sm:$0x3] %vm7, %v6
    %v9 = vld [vmem:[#allocation0] sm:$0x3]
    %10 = vrot.lane.b32.xlu0 %v9, 127
    %v11 = vpop.permute.xlu0 %10
    %vm12 = vcmask 7168
    %s13 = scalar_lea.vmem %s1, 1
    %14 = vst.msk [vmem:[%s13] ss:$4 sm:$0x3] %vm12, %v11
    %v15 = vld [vmem:[#allocation0] sm:$0x3]
    %16 = vrot.lane.b32.xlu0 %v15, 126
    %v17 = vpop.permute.xlu0 %16
    %vm18 = vcmask 7168
    %s19 = scalar_lea.vmem %s1, 2
    %20 = vst.msk [vmem:[%s19] ss:$4 sm:$0x3] %vm18, %v17
    %v21 = vld [vmem:[#allocation0] sm:$0x3]
    %22 = vrot.lane.b32.xlu0 %v21, 125
    %v23 = vpop.permute.xlu0 %22
    %vm24 = vcmask 7168
    %s25 = scalar_lea.vmem %s1, 3
    %26 = vst.msk [vmem:[%s25] ss:$4 sm:$0x3] %vm24, %v23

// kernel: odefunc_forward.1
$region0: #{odefunc_forward.1}
  #allocation0 [shape = 'u32[]', space=smem, size = 0x4, offset = 0x4, fixed_abs, tag = 'smem constant byte address 0x4 - core index']
  #allocation1 [shape = 'u32[144,128]{1,0:T(1,128)}', space=vmem, size = 0x12000, scoped, tag = 'internal scratch']
  %s0 = inlined_call_operand.vmem [shape: f32[1,8,256], index: 0, kind: input, shape index: {}]
  %s1 = inlined_call_operand.vmem [shape: f32[8,256], index: 1, kind: input, shape index: {}]
  %s2 = inlined_call_operand.vmem [shape: f32[8,72], index: 2, kind: input, shape index: {}]
  %s3 = inlined_call_operand.vmem [shape: f32[8,1], index: 3, kind: input, shape index: {}]
  %s4 = inlined_call_operand.vmem [shape: f32[8,72], index: 4, kind: input, shape index: {}]
  %s5 = inlined_call_operand.vmem [shape: f32[8,1], index: 5, kind: input, shape index: {}]
  %s6 = inlined_call_operand.vmem [shape: f32[1,8,256], index: 6, kind: output, shape index: {}]
  %s7 = sld [smem:[#allocation0]]
  $region34: #{odefunc_forward.1} parent=0
    _
  %s9 = ssub.s32 1, %s7
  %s10 = scalar_select 0, %s9, %s7
  // Predicated region
  $region2: #{odefunc_forward.1} parent=0 // pred_check
    _
  $region3: #{odefunc_forward.1} parent=0 // pred_check_branch
    %12 = sbr.rel (0) target = $region5
  $region4: #{odefunc_forward.1} parent=0 // pred_region
    _
  $region5: #{odefunc_forward.1} parent=0 // pred_fallthru
    _
  // Predicated region
  $region6: #{odefunc_forward.1} parent=0 // pred_check
    _
  $region7: #{odefunc_forward.1} parent=0 // pred_check_branch
    %14 = sbr.rel (0) target = $region9
  $region8: #{odefunc_forward.1} parent=0 // pred_region
    _
  $region9: #{odefunc_forward.1} parent=0 // pred_fallthru
    _
  // Predicated region
  $region10: #{odefunc_forward.1} parent=0 // pred_check
    _
  $region11: #{odefunc_forward.1} parent=0 // pred_check_branch
    %16 = sbr.rel (0) target = $region13
  $region12: #{odefunc_forward.1} parent=0 // pred_region
    _
  $region13: #{odefunc_forward.1} parent=0 // pred_fallthru
    _
  // Predicated region
  $region14: #{odefunc_forward.1} parent=0 // pred_check
    _
  $region15: #{odefunc_forward.1} parent=0 // pred_check_branch
    %18 = sbr.rel (0) target = $region17
  $region16: #{odefunc_forward.1} parent=0 // pred_region
    _
  $region17: #{odefunc_forward.1} parent=0 // pred_fallthru
    _
  // Predicated region
  $region18: #{odefunc_forward.1} parent=0 // pred_check
    _
  $region19: #{odefunc_forward.1} parent=0 // pred_check_branch
    %20 = sbr.rel (0) target = $region21
  $region20: #{odefunc_forward.1} parent=0 // pred_region
    _
  $region21: #{odefunc_forward.1} parent=0 // pred_fallthru
    _
  // Predicated region
  $region22: #{odefunc_forward.1} parent=0 // pred_check
    _
  $region23: #{odefunc_forward.1} parent=0 // pred_check_branch
    %22 = sbr.rel (0) target = $region25
  $region24: #{odefunc_forward.1} parent=0 // pred_region
    _
  $region25: #{odefunc_forward.1} parent=0 // pred_fallthru
    _
  %v23 = vld [vmem:[%s0] sm:$0xff]
  %v24 = vld [vmem:[%s0 + $0x8] sm:$0xff]
  %v25 = vld [vmem:[%s1] sm:$0xff]
  %v26 = vld [vmem:[%s1 + $0x8] sm:$0xff]
  %v27 = vld [vmem:[%s2] sm:$0xff]
  %28 = vrot.lane.b32.xlu0 %v23, 17
  %v29 = vpop.permute.xlu0 %28
  %30 = vrot.lane.b32.xlu0 %v24, 17
  %v31 = vpop.permute.xlu0 %30
  %v32 = vlaneseq
  %v33 = vand.u32 %v32, 127
  %vm34 = vcmp.lt.s32.totalorder %v33, 17
  %v35 = vsel %vm34, %v29, %v31
  %v36 = vsel %vm34, %v31, %v29
  %v37 = vlaneseq
  %v38 = vshrl.u32 %v37, 7
  %v39 = vsub.s32 0, %v38
  %v40 = vrot.slane %v25, %v39
  %v41 = vlaneseq
  %v42 = vshrl.u32 %v41, 7
  %v43 = vsub.s32 0, %v42
  %v44 = vrot.slane %v26, %v43
  %v45 = vmul.f32 %v36, %v40
  %v46 = vmul.f32 %v35, %v44
  %47 = vrot.lane.b32.xlu0 %v23, 16
  %v48 = vpop.permute.xlu0 %47
  %49 = vrot.lane.b32.xlu0 %v24, 16
  %v50 = vpop.permute.xlu0 %49
  %vm51 = vcmp.lt.s32.totalorder %v33, 16
  %v52 = vsel %vm51, %v48, %v50
  %v53 = vsel %vm51, %v50, %v48
  %v54 = vlaneseq
  %v55 = vshrl.u32 %v54, 7
  %v56 = vsub.s32 1, %v55
  %v57 = vrot.slane %v25, %v56
  %v58 = vlaneseq
  %v59 = vshrl.u32 %v58, 7
  %v60 = vsub.s32 1, %v59
  %v61 = vrot.slane %v26, %v60
  %v62 = vmul.f32 %v53, %v57
  %v63 = vmul.f32 %v52, %v61
  %64 = vrot.lane.b32.xlu0 %v23, 15
  %v65 = vpop.permute.xlu0 %64
  %66 = vrot.lane.b32.xlu0 %v24, 15
  %v67 = vpop.permute.xlu0 %66
  %vm68 = vcmp.lt.s32.totalorder %v33, 15
  %v69 = vsel %vm68, %v65, %v67
  %v70 = vsel %vm68, %v67, %v65
  %v71 = vlaneseq
  %v72 = vshrl.u32 %v71, 7
  %v73 = vsub.s32 2, %v72
  %v74 = vrot.slane %v25, %v73
  %v75 = vlaneseq
  %v76 = vshrl.u32 %v75, 7
  %v77 = vsub.s32 2, %v76
  %v78 = vrot.slane %v26, %v77
  %v79 = vmul.f32 %v70, %v74
  %v80 = vmul.f32 %v69, %v78
  %81 = vrot.lane.b32.xlu0 %v23, 1
  %v82 = vpop.permute.xlu0 %81
  %83 = vrot.lane.b32.xlu0 %v24, 1
  %v84 = vpop.permute.xlu0 %83
  %vm85 = vcmp.lt.s32.totalorder %v33, 1
  %v86 = vsel %vm85, %v82, %v84
  %v87 = vsel %vm85, %v84, %v82
  %v88 = vlaneseq
  %v89 = vshrl.u32 %v88, 7
  %v90 = vsub.s32 3, %v89
  %v91 = vrot.slane %v25, %v90
  %v92 = vlaneseq
  %v93 = vshrl.u32 %v92, 7
  %v94 = vsub.s32 3, %v93
  %v95 = vrot.slane %v26, %v94
  %v96 = vmul.f32 %v87, %v91
  %v97 = vmul.f32 %v86, %v95
  %98 = vrot.lane.b32.xlu0 %v23, 127
  %v99 = vpop.permute.xlu0 %98
  %100 = vrot.lane.b32.xlu0 %v24, 127
  %v101 = vpop.permute.xlu0 %100
  %vm102 = vcmp.lt.s32.totalorder %v33, 127
  %v103 = vsel %vm102, %v99, %v101
  %v104 = vsel %vm102, %v101, %v99
  %v105 = vlaneseq
  %v106 = vshrl.u32 %v105, 7
  %v107 = vsub.s32 4, %v106
  %v108 = vrot.slane %v25, %v107
  %v109 = vlaneseq
  %v110 = vshrl.u32 %v109, 7
  %v111 = vsub.s32 4, %v110
  %v112 = vrot.slane %v26, %v111
  %v113 = vmul.f32 %v103, %v108
  %v114 = vmul.f32 %v104, %v112
  %115 = vrot.lane.b32.xlu0 %v23, 113
  %v116 = vpop.permute.xlu0 %115
  %117 = vrot.lane.b32.xlu0 %v24, 113
  %v118 = vpop.permute.xlu0 %117
  %vm119 = vcmp.lt.s32.totalorder %v33, 113
  %v120 = vsel %vm119, %v116, %v118
  %v121 = vsel %vm119, %v118, %v116
  %v122 = vlaneseq
  %v123 = vshrl.u32 %v122, 7
  %v124 = vsub.s32 5, %v123
  %v125 = vrot.slane %v25, %v124
  %v126 = vlaneseq
  %v127 = vshrl.u32 %v126, 7
  %v128 = vsub.s32 5, %v127
  %v129 = vrot.slane %v26, %v128
  %v130 = vmul.f32 %v120, %v125
  %v131 = vmul.f32 %v121, %v129
  %132 = vrot.lane.b32.xlu0 %v23, 112
  %v133 = vpop.permute.xlu0 %132
  %134 = vrot.lane.b32.xlu0 %v24, 112
  %v135 = vpop.permute.xlu0 %134
  %vm136 = vcmp.lt.s32.totalorder %v33, 112
  %v137 = vsel %vm136, %v133, %v135
  %v138 = vsel %vm136, %v135, %v133
  %v139 = vlaneseq
  %v140 = vshrl.u32 %v139, 7
  %v141 = vsub.s32 6, %v140
  %v142 = vrot.slane %v25, %v141
  %v143 = vlaneseq
  %v144 = vshrl.u32 %v143, 7
  %v145 = vsub.s32 6, %v144
  %v146 = vrot.slane %v26, %v145
  %v147 = vmul.f32 %v137, %v142
  %v148 = vmul.f32 %v138, %v146
  %149 = vrot.lane.b32.xlu0 %v23, 111
  %v150 = vpop.permute.xlu0 %149
  %151 = vrot.lane.b32.xlu0 %v24, 111
  %v152 = vpop.permute.xlu0 %151
  %vm153 = vcmp.lt.s32.totalorder %v33, 111
  %v154 = vsel %vm153, %v150, %v152
  %v155 = vsel %vm153, %v152, %v150
  %v156 = vlaneseq
  %v157 = vshrl.u32 %v156, 7
  %v158 = vsub.s32 7, %v157
  %v159 = vrot.slane %v25, %v158
  %v160 = vlaneseq
  %v161 = vshrl.u32 %v160, 7
  %v162 = vsub.s32 7, %v161
  %v163 = vrot.slane %v26, %v162
  %v164 = vmul.f32 %v154, %v159
  %v165 = vmul.f32 %v155, %v163
  %v166 = vld [vmem:[%s3] sm:$0xff]
  %168 = vset.pattern.permute.xlu0 0
  %169 = vperm.xlu0 %168, %v166
  %v170 = vpop.permute.xlu0 %169
  %vm172 = vcmask 588800
  %v174 = vsel %vm172, %v27, 0
  %176 = vmatprep.subr.mxu0 %v46
  %177 = vmatpush1.msra.mxu0 %v45
  %178 = vmatprep.subr.mxu0 %v63
  %179 = vmatpush1.msra.mxu0 %v62
  %180 = vmatprep.subr.mxu0 %v80
  %181 = vmatpush1.msra.mxu0 %v79
  %182 = vmatprep.subr.mxu0 %v97
  %183 = vmatpush1.msra.mxu0 %v96
  %184 = vmatprep.subr.mxu0 %v24
  %185 = vmatpush1.msra.mxu0 %v23
  %186 = vmatprep.subr.mxu0 %v114
  %187 = vmatpush1.msra.mxu0 %v113
  %188 = vmatprep.subr.mxu0 %v131
  %189 = vmatpush1.msra.mxu0 %v130
  %190 = vmatprep.subr.mxu0 %v148
  %191 = vmatpush1.msra.mxu0 %v147
  %192 = vmatprep.subr.mxu0 %v165
  %193 = vmatpush1.msra.mxu0 %v164
  %194 = vmatprep.subr.mxu0 0.0
  %195 = vmatpush1.msra.mxu0 0.0
  %196 = vmatprep.subr.mxu0 0.0
  %197 = vmatpush1.msra.mxu0 0.0
  %198 = vmatprep.subr.mxu0 0.0
  %199 = vmatpush1.msra.mxu0 0.0
  %200 = vmatprep.subr.mxu0 0.0
  %201 = vmatpush1.msra.mxu0 0.0
  %202 = vmatprep.subr.mxu0 0.0
  %203 = vmatpush1.msra.mxu0 0.0
  %204 = vmatprep.subr.mxu0 0.0
  %205 = vmatpush1.msra.mxu0 0.0
  %206 = vmatprep.subr.mxu0 0.0
  %207 = vmatpush1.msra.mxu0 0.0
  %208 = vmatprep.subr.mxu0 0.0
  %209 = vmatpush1.msra.mxu0 0.0
  %210 = vmatprep.subr.mxu0 0.0
  %211 = vmatpush1.msra.mxu0 0.0
  %212 = vmatprep.subr.mxu0 0.0
  %213 = vmatpush1.msra.mxu0 0.0
  %214 = vmatprep.subr.mxu0 0.0
  %215 = vmatpush1.msra.mxu0 0.0
  %216 = vmatprep.subr.mxu0 0.0
  %217 = vmatpush1.msra.mxu0 0.0
  %218 = vmatprep.subr.mxu0 0.0
  %219 = vmatpush1.msra.mxu0 0.0
  %220 = vmatprep.subr.mxu0 0.0
  %221 = vmatpush1.msra.mxu0 0.0
  %222 = vmatprep.subr.mxu0 0.0
  %223 = vmatpush1.msra.mxu0 0.0
  %224 = vmatprep.subr.mxu0 0.0
  %225 = vmatpush1.msra.mxu0 0.0
  %226 = vmatprep.subr.mxu0 0.0
  %227 = vmatpush1.msra.mxu0 0.0
  %228 = vmatprep.subr.mxu0 0.0
  %229 = vmatpush1.msra.mxu0 0.0
  %230 = vmatprep.subr.mxu0 0.0
  %231 = vmatpush1.msra.mxu0 0.0
  %232 = vmatprep.subr.mxu0 0.0
  %233 = vmatpush1.msra.mxu0 0.0
  %234 = vmatprep.subr.mxu0 0.0
  %235 = vmatpush1.msra.mxu0 0.0
  %236 = vmatprep.subr.mxu0 0.0
  %237 = vmatpush1.msra.mxu0 0.0
  %238 = vmatprep.subr.mxu0 0.0
  %239 = vmatpush1.msra.mxu0 0.0
  %240 = vmatprep.mubr.f32.mxu0 0.0
  %241 = vmatmul.mubr.f32.gmra.mrb[0].mxu0 %v174
  %v242 = vpop.f32.mrb[0].mxu0
  %v243 = vadd.f32 %v170, %v242
  %v244 = vpop.f32.mrb[0].mxu0
  %v245 = vadd.f32 %v170, %v244
  %246 = vdwg.mxu0
  %v247 = vmax.f32 %v243, 0.0
  %v248 = vmax.f32 %v245, 0.0
  %v249 = vld [vmem:[%s4] sm:$0xff]
  %250 = vrot.lane.b32.xlu0 %v247, 17
  %v251 = vpop.permute.xlu0 %250
  %252 = vrot.lane.b32.xlu0 %v248, 17
  %v253 = vpop.permute.xlu0 %252
  %v254 = vsel %vm34, %v251, %v253
  %v255 = vsel %vm34, %v253, %v251
  %v256 = vmul.f32 %v255, %v40
  %v257 = vmul.f32 %v254, %v44
  %258 = vrot.lane.b32.xlu0 %v247, 16
  %v259 = vpop.permute.xlu0 %258
  %260 = vrot.lane.b32.xlu0 %v248, 16
  %v261 = vpop.permute.xlu0 %260
  %v262 = vsel %vm51, %v259, %v261
  %v263 = vsel %vm51, %v261, %v259
  %v264 = vmul.f32 %v263, %v57
  %v265 = vmul.f32 %v262, %v61
  %266 = vrot.lane.b32.xlu0 %v247, 15
  %v267 = vpop.permute.xlu0 %266
  %268 = vrot.lane.b32.xlu0 %v248, 15
  %v269 = vpop.permute.xlu0 %268
  %v270 = vsel %vm68, %v267, %v269
  %v271 = vsel %vm68, %v269, %v267
  %v272 = vmul.f32 %v271, %v74
  %v273 = vmul.f32 %v270, %v78
  %274 = vrot.lane.b32.xlu0 %v247, 1
  %v275 = vpop.permute.xlu0 %274
  %276 = vrot.lane.b32.xlu0 %v248, 1
  %v277 = vpop.permute.xlu0 %276
  %v278 = vsel %vm85, %v275, %v277
  %v279 = vsel %vm85, %v277, %v275
  %v280 = vmul.f32 %v279, %v91
  %v281 = vmul.f32 %v278, %v95
  %282 = vrot.lane.b32.xlu0 %v247, 127
  %v283 = vpop.permute.xlu0 %282
  %284 = vrot.lane.b32.xlu0 %v248, 127
  %v285 = vpop.permute.xlu0 %284
  %v286 = vsel %vm102, %v283, %v285
  %v287 = vsel %vm102, %v285, %v283
  %v288 = vmul.f32 %v286, %v108
  %v289 = vmul.f32 %v287, %v112
  %290 = vrot.lane.b32.xlu0 %v247, 113
  %v291 = vpop.permute.xlu0 %290
  %292 = vrot.lane.b32.xlu0 %v248, 113
  %v293 = vpop.permute.xlu0 %292
  %v294 = vsel %vm119, %v291, %v293
  %v295 = vsel %vm119, %v293, %v291
  %v296 = vmul.f32 %v294, %v125
  %v297 = vmul.f32 %v295, %v129
  %298 = vrot.lane.b32.xlu0 %v247, 112
  %v299 = vpop.permute.xlu0 %298
  %300 = vrot.lane.b32.xlu0 %v248, 112
  %v301 = vpop.permute.xlu0 %300
  %v302 = vsel %vm136, %v299, %v301
  %v303 = vsel %vm136, %v301, %v299
  %v304 = vmul.f32 %v302, %v142
  %v305 = vmul.f32 %v303, %v146
  %306 = vrot.lane.b32.xlu0 %v247, 111
  %v307 = vpop.permute.xlu0 %306
  %308 = vrot.lane.b32.xlu0 %v248, 111
  %v309 = vpop.permute.xlu0 %308
  %v310 = vsel %vm153, %v307, %v309
  %v311 = vsel %vm153, %v309, %v307
  %v312 = vmul.f32 %v310, %v159
  %v313 = vmul.f32 %v311, %v163
  %v314 = vld [vmem:[%s5] sm:$0xff]
  %316 = vset.pattern.permute.xlu0 0
  %317 = vperm.xlu0 %316, %v314
  %v318 = vpop.permute.xlu0 %317
  %v321 = vsel %vm172, %v249, 0
  %323 = vmatprep.subr.mxu0 %v257
  %324 = vmatpush1.msra.mxu0 %v256
  %325 = vmatprep.subr.mxu0 %v265
  %326 = vmatpush1.msra.mxu0 %v264
  %327 = vmatprep.subr.mxu0 %v273
  %328 = vmatpush1.msra.mxu0 %v272
  %329 = vmatprep.subr.mxu0 %v281
  %330 = vmatpush1.msra.mxu0 %v280
  %331 = vmatprep.subr.mxu0 %v248
  %332 = vmatpush1.msra.mxu0 %v247
  %333 = vmatprep.subr.mxu0 %v289
  %334 = vmatpush1.msra.mxu0 %v288
  %335 = vmatprep.subr.mxu0 %v297
  %336 = vmatpush1.msra.mxu0 %v296
  %337 = vmatprep.subr.mxu0 %v305
  %338 = vmatpush1.msra.mxu0 %v304
  %339 = vmatprep.subr.mxu0 %v313
  %340 = vmatpush1.msra.mxu0 %v312
  %341 = vmatprep.subr.mxu0 0.0
  %342 = vmatpush1.msra.mxu0 0.0
  %343 = vmatprep.subr.mxu0 0.0
  %344 = vmatpush1.msra.mxu0 0.0
  %345 = vmatprep.subr.mxu0 0.0
  %346 = vmatpush1.msra.mxu0 0.0
  %347 = vmatprep.subr.mxu0 0.0
  %348 = vmatpush1.msra.mxu0 0.0
  %349 = vmatprep.subr.mxu0 0.0
  %350 = vmatpush1.msra.mxu0 0.0
  %351 = vmatprep.subr.mxu0 0.0
  %352 = vmatpush1.msra.mxu0 0.0
  %353 = vmatprep.subr.mxu0 0.0
  %354 = vmatpush1.msra.mxu0 0.0
  %355 = vmatprep.subr.mxu0 0.0
  %356 = vmatpush1.msra.mxu0 0.0
  %357 = vmatprep.subr.mxu0 0.0
  %358 = vmatpush1.msra.mxu0 0.0
  %359 = vmatprep.subr.mxu0 0.0
  %360 = vmatpush1.msra.mxu0 0.0
  %361 = vmatprep.subr.mxu0 0.0
  %362 = vmatpush1.msra.mxu0 0.0
  %363 = vmatprep.subr.mxu0 0.0
  %364 = vmatpush1.msra.mxu0 0.0
  %365 = vmatprep.subr.mxu0 0.0
  %366 = vmatpush1.msra.mxu0 0.0
  %367 = vmatprep.subr.mxu0 0.0
  %368 = vmatpush1.msra.mxu0 0.0
  %369 = vmatprep.subr.mxu0 0.0
  %370 = vmatpush1.msra.mxu0 0.0
  %371 = vmatprep.subr.mxu0 0.0
  %372 = vmatpush1.msra.mxu0 0.0
  %373 = vmatprep.subr.mxu0 0.0
  %374 = vmatpush1.msra.mxu0 0.0
  %375 = vmatprep.subr.mxu0 0.0
  %376 = vmatpush1.msra.mxu0 0.0
  %377 = vmatprep.subr.mxu0 0.0
  %378 = vmatpush1.msra.mxu0 0.0
  %379 = vmatprep.subr.mxu0 0.0
  %380 = vmatpush1.msra.mxu0 0.0
  %381 = vmatprep.subr.mxu0 0.0
  %382 = vmatpush1.msra.mxu0 0.0
  %383 = vmatprep.subr.mxu0 0.0
  %384 = vmatpush1.msra.mxu0 0.0
  %385 = vmatprep.subr.mxu0 0.0
  %386 = vmatpush1.msra.mxu0 0.0
  %387 = vmatprep.mubr.f32.mxu0 0.0
  %388 = vmatmul.mubr.f32.gmra.mrb[0].mxu0 %v321
  %v389 = vpop.f32.mrb[0].mxu0
  %v390 = vadd.f32 %v318, %v389
  %v391 = vpop.f32.mrb[0].mxu0
  %v392 = vadd.f32 %v318, %v391
  %393 = vdwg.mxu0
  %394 = vst [vmem:[%s6] sm:$0xff] %v390
  %395 = vst [vmem:[%s6 + $0x8] sm:$0xff] %v392
  // Predicated region
  $region26: #{odefunc_forward.1} parent=0 // pred_check
    _
  $region27: #{odefunc_forward.1} parent=0 // pred_check_branch
    %397 = sbr.rel (0) target = $region29
  $region28: #{odefunc_forward.1} parent=0 // pred_region
    _
  $region29: #{odefunc_forward.1} parent=0 // pred_fallthru
    _
  // Predicated region
  $region30: #{odefunc_forward.1} parent=0 // pred_check
    _
  $region31: #{odefunc_forward.1} parent=0 // pred_check_branch
    %399 = sbr.rel (0) target = $region33
  $region32: #{odefunc_forward.1} parent=0 // pred_region
    _
  $region33: #{odefunc_forward.1} parent=0 // pred_fallthru
    _

</llo_original>
